<compile_context>
chip_gen: v5e
topology: v5e:2x2
jax: 0.10.0
libtpu: 0.0.40
codegen_flags: <defaults>
</compile_context>

<pallas_src>
import functools

import jax
import jax.numpy as jnp
from jax.experimental import pallas as pl
from jax.experimental.pallas import tpu as pltpu


# ---------------------------------------------------------------------------
# Shared elementwise gate math (traced inside both kernels).
#   gx = [xs | xw | pre(f_s) | pre(o_s)]  (bias already fused)
#   gs = [pre(f_f) | pre(o_f)]            (bias already fused)
# ---------------------------------------------------------------------------
def _gates(gx, gs, s_prev, f_prev, H):
    xs = gx[:, 0 * H:1 * H]
    xw = gx[:, 1 * H:2 * H]
    sig_x = jax.nn.sigmoid(gx[:, 2 * H:4 * H])   # one contiguous 2H-wide slab
    sig_s = jax.nn.sigmoid(gs)                   # one contiguous 2H-wide slab
    f_s = sig_x[:, 0:H]
    o_s = sig_x[:, H:2 * H]
    f_f = sig_s[:, 0:H]
    o_f = sig_s[:, H:2 * H]

    s = xs * (1.0 - f_s) + s_prev * f_s
    f = s_prev * (1.0 - f_s) + f_prev * f_f
    h = jnp.tanh(s) * o_s + jnp.tanh(f) * o_f + xw
    return s, f, h


# ---------------------------------------------------------------------------
# Single-timestep kernel (matches Lstmcell.forward exactly).
# ---------------------------------------------------------------------------
def _lstmcell_kernel(x_ref, sprev_ref, fprev_ref,
                     wx_ref, ws_ref, bx_ref, bs_ref,
                     out_ref):
    H = sprev_ref.shape[-1]
    s_prev = sprev_ref[...].astype(jnp.float32)
    f_prev = fprev_ref[...].astype(jnp.float32)

    gx = jnp.dot(x_ref[...], wx_ref[...],
                 preferred_element_type=jnp.float32) + bx_ref[...]
    gs = jnp.dot(s_prev.astype(ws_ref.dtype), ws_ref[...],
                 preferred_element_type=jnp.float32) + bs_ref[...]

    s, f, h = _gates(gx, gs, s_prev, f_prev, H)

    # Direct column sub-slice stores (no in-kernel concatenate / relayout).
    out_ref[:, 0 * H:1 * H] = s.astype(out_ref.dtype)
    out_ref[:, 1 * H:2 * H] = f.astype(out_ref.dtype)
    out_ref[:, 2 * H:3 * H] = h.astype(out_ref.dtype)


def lstmcell_forward(x, packed, s_prev=None, f_prev=None):
    """x: (B, 1, input_size). Returns (s, f, h), each (B, 1, hidden)."""
    B, one, I = x.shape
    assert one == 1
    H = packed["ws"].shape[0]
    dtype = x.dtype

    if s_prev is None:
        s_prev = jnp.zeros((B, 1, H), dtype=dtype)
    if f_prev is None:
        f_prev = jnp.zeros((B, 1, H), dtype=dtype)

    x2 = x.reshape(B, I)
    s2 = s_prev.reshape(B, H)
    f2 = f_prev.reshape(B, H)

    vmem = pl.BlockSpec(memory_space=pltpu.MemorySpace.VMEM)
    out = pl.pallas_call(
        _lstmcell_kernel,
        out_shape=jax.ShapeDtypeStruct((B, 3 * H), dtype),
        in_specs=[vmem] * 7,
        out_specs=vmem,
    )(x2, s2, f2, packed["wx"], packed["ws"], packed["bx"], packed["bs"])

    s = out[:, 0 * H:1 * H].reshape(B, 1, H)
    f = out[:, 1 * H:2 * H].reshape(B, 1, H)
    h = out[:, 2 * H:3 * H].reshape(B, 1, H)
    return s, f, h


# ---------------------------------------------------------------------------
# Sequence kernel: Tb timesteps per grid step, unrolled inside the body.
#   grid = (B/Bb, T/Tb), dims = ("parallel", "arbitrary")
#   gx (precomputed x-projection incl. bias) is streamed per (b, t) block;
#   ws / bs stay VMEM-resident; s/f state lives in VMEM scratch across grid
#   iterations; h is written as one lane-dense (Bb, Tb*H) slab per grid step.
# ---------------------------------------------------------------------------
def _lstm_seq_kernel(gx_ref, s0_ref, f0_ref, ws_ref, bs_ref,
                     h_out_ref, sf_out_ref,
                     s_state, f_state, *, tb, hidden):
    H = hidden
    t_blk = pl.program_id(1)

    @pl.when(t_blk == 0)
    def _init():
        s_state[...] = s0_ref[...].astype(jnp.float32)
        f_state[...] = f0_ref[...].astype(jnp.float32)

    ws = ws_ref[...]
    bs = bs_ref[...]
    s = s_state[...]
    f = f_state[...]

    hs = []
    # Statically unrolled inner time loop (tb is a small compile-time constant).
    for t_local in range(tb):
        gx_t = gx_ref[t_local]                                 # (Bb, 4H)
        gs = jnp.dot(s.astype(ws.dtype), ws,
                     preferred_element_type=jnp.float32) + bs  # (Bb, 2H)
        s, f, h = _gates(gx_t, gs, s, f, H)
        hs.append(h)

    s_state[...] = s
    f_state[...] = f

    # One lane-dense (Bb, Tb*H) store per grid step.
    h_out_ref[...] = jnp.concatenate(hs, axis=-1).astype(h_out_ref.dtype)

    @pl.when(t_blk == pl.num_programs(1) - 1)
    def _finalize():
        sf_out_ref[:, 0:H] = s.astype(sf_out_ref.dtype)
        sf_out_ref[:, H:2 * H] = f.astype(sf_out_ref.dtype)


def _pick_time_block(T, H):
    # Smallest divisor of T (<=16) giving a lane-dense (multiple-of-128) h
    # block; fall back to the whole sequence in one grid step.
    for tb in range(1, min(T, 16) + 1):
        if T % tb == 0 and (tb * H) % 128 == 0:
            return tb
    return T


def lstm_sequence_forward(x_seq, packed, s0=None, f0=None,
                          *, time_block=None, batch_block=None):
    """x_seq: (B, T, input_size). Runs the Lstmcell recurrence over T steps
    with the time loop inside the kernel. Returns (h_seq (B,T,H),
    s_final (B,1,H), f_final (B,1,H))."""
    B, T, I = x_seq.shape
    H = packed["ws"].shape[0]
    dtype = x_seq.dtype

    Tb = _pick_time_block(T, H) if time_block is None else time_block
    Bb = B if batch_block is None else batch_block
    assert T % Tb == 0, f"time_block {Tb} must divide T={T}"
    assert B % Bb == 0, f"batch_block {Bb} must divide B={B}"

    if s0 is None:
        s0 = jnp.zeros((B, H), dtype=dtype)
    if f0 is None:
        f0 = jnp.zeros((B, H), dtype=dtype)
    s0 = s0.reshape(B, H)
    f0 = f0.reshape(B, H)

    # Hoist the x-projection out of the serial recurrence: one large, well
    # utilized matmul over all T*B rows; bias fused; output produced directly
    # in time-major layout (no separate transpose pass).
    gx_all = (jnp.einsum("bti,ij->tbj", x_seq, packed["wx"],
                         preferred_element_type=jnp.float32)
              + packed["bx"]).astype(jnp.float32)              # (T, B, 4H)

    kernel = functools.partial(_lstm_seq_kernel, tb=Tb, hidden=H)

    grid_spec = pltpu.PrefetchScalarGridSpec(
        num_scalar_prefetch=0,
        grid=(B // Bb, T // Tb),
        in_specs=[
            pl.BlockSpec((Tb, Bb, 4 * H), lambda b, t: (t, b, 0)),  # gx streamed
            pl.BlockSpec((Bb, H), lambda b, t: (b, 0)),             # s0
            pl.BlockSpec((Bb, H), lambda b, t: (b, 0)),             # f0
            pl.BlockSpec((H, 2 * H), lambda b, t: (0, 0)),          # Ws_cat resident
            pl.BlockSpec((1, 2 * H), lambda b, t: (0, 0)),          # bs_cat resident
        ],
        out_specs=(
            pl.BlockSpec((Bb, Tb * H), lambda b, t: (b, t)),        # lane-dense h
            pl.BlockSpec((Bb, 2 * H), lambda b, t: (b, 0)),         # final [s|f]
        ),
        scratch_shapes=[
            pltpu.VMEM((Bb, H), jnp.float32),                       # s state carry
            pltpu.VMEM((Bb, H), jnp.float32),                       # f state carry
        ],
    )

    h_packed, sf = pl.pallas_call(
        kernel,
        out_shape=(
            jax.ShapeDtypeStruct((B, T * H), dtype),
            jax.ShapeDtypeStruct((B, 2 * H), dtype),
        ),
        grid_spec=grid_spec,
        compiler_params=pltpu.CompilerParams(
            dimension_semantics=("parallel", "arbitrary")),
    )(gx_all, s0, f0, packed["ws"], packed["bs"])

    h_seq = h_packed.reshape(B, T, H)
    s_final = sf[:, :H].reshape(B, 1, H)
    f_final = sf[:, H:].reshape(B, 1, H)
    return h_seq, s_final, f_final


# ---------------------------------------------------------------------------
# Parameter init / packing and pure-JAX references.
# ---------------------------------------------------------------------------
def xavier_uniform(key, shape, dtype=jnp.float32):
    fan_in, fan_out = shape
    limit = (6.0 / (fan_in + fan_out)) ** 0.5
    return jax.random.uniform(key, shape, dtype=dtype, minval=-limit, maxval=limit)


def init_lstmcell_params(key, input_size, hidden_size):
    ks = jax.random.split(key, 6)
    return {
        "w_s":  xavier_uniform(ks[0], (input_size, hidden_size)),
        "w":    xavier_uniform(ks[1], (input_size, hidden_size)),
        "wf_s": xavier_uniform(ks[2], (input_size, hidden_size)),
        "wf_f": xavier_uniform(ks[3], (hidden_size, hidden_size)),
        "wo_s": xavier_uniform(ks[4], (input_size, hidden_size)),
        "wo_f": xavier_uniform(ks[5], (hidden_size, hidden_size)),
        "bf_s": jnp.zeros((hidden_size,), jnp.float32),
        "bf_f": jnp.zeros((hidden_size,), jnp.float32),
        "bo_s": jnp.zeros((hidden_size,), jnp.float32),
        "bo_f": jnp.zeros((hidden_size,), jnp.float32),
    }


def pack_lstmcell_params(params):
    """Fuse the 6 weights into (I,4H)/(H,2H) blocks and the biases to match.
    Done once, outside any kernel (weight layout change, not per-call work)."""
    H = params["w_s"].shape[1]
    wx = jnp.concatenate([params["w_s"], params["w"],
                          params["wf_s"], params["wo_s"]], axis=1)          # (I, 4H)
    ws = jnp.concatenate([params["wf_f"], params["wo_f"]], axis=1)          # (H, 2H)
    zeros = jnp.zeros((H,), params["bf_s"].dtype)
    bx = jnp.concatenate([zeros, zeros,
                          params["bf_s"], params["bo_s"]]).reshape(1, 4 * H)
    bs = jnp.concatenate([params["bf_f"], params["bo_f"]]).reshape(1, 2 * H)
    return {"wx": wx, "ws": ws, "bx": bx, "bs": bs}


def lstmcell_reference(x, params, s_prev, f_prev):
    """Pure-JAX reference mirroring the PyTorch Lstmcell.forward exactly."""
    xs = jnp.matmul(x, params["w_s"])
    f_s = jax.nn.sigmoid(jnp.matmul(x, params["wf_s"]) + params["bf_s"])
    f_f = jax.nn.sigmoid(jnp.matmul(s_prev, params["wf_f"]) + params["bf_f"])
    o_s = jax.nn.sigmoid(jnp.matmul(x, params["wo_s"]) + params["bo_s"])
    o_f = jax.nn.sigmoid(jnp.matmul(s_prev, params["wo_f"]) + params["bo_f"])
    s = xs * (1 - f_s) + s_prev * f_s
    f = s_prev * (1 - f_s) + f_prev * f_f
    h = jnp.tanh(s) * o_s + jnp.tanh(f) * o_f + jnp.matmul(x, params["w"])
    return s, f, h


def lstm_sequence_reference(x_seq, params, s0=None, f0=None):
    B, T, I = x_seq.shape
    H = params["w_s"].shape[1]
    s = jnp.zeros((B, 1, H), x_seq.dtype) if s0 is None else s0.reshape(B, 1, H)
    f = jnp.zeros((B, 1, H), x_seq.dtype) if f0 is None else f0.reshape(B, 1, H)
    hs = []
    for t in range(T):
        s, f, h = lstmcell_reference(x_seq[:, t:t + 1, :], params, s, f)
        hs.append(h)
    return jnp.concatenate(hs, axis=1), s, f


# ---------------------------------------------------------------------------
if __name__ == "__main__":
    key = jax.random.PRNGKey(0)
    k_param, k_x, k_s, k_f, k_seq = jax.random.split(key, 5)

    batch, input_size, hidden_size, seq_len = 8, 16, 32, 8

    params = init_lstmcell_params(k_param, input_size, hidden_size)
    packed = pack_lstmcell_params(params)

    # --- single timestep (matches Lstmcell.forward) ---
    x = jax.random.normal(k_x, (batch, 1, input_size), dtype=jnp.float32)
    s_prev = jax.random.normal(k_s, (batch, 1, hidden_size), dtype=jnp.float32)
    f_prev = jax.random.normal(k_f, (batch, 1, hidden_size), dtype=jnp.float32)

    s, f, h = lstmcell_forward(x, packed, s_prev, f_prev)
    jax.block_until_ready((s, f, h))

    s_ref, f_ref, h_ref = lstmcell_reference(x, params, s_prev, f_prev)
    assert jnp.allclose(s, s_ref, atol=1e-4), "single-step s mismatch"
    assert jnp.allclose(f, f_ref, atol=1e-4), "single-step f mismatch"
    assert jnp.allclose(h, h_ref, atol=1e-4), "single-step h mismatch"

    # --- full recurrence over a sequence, blocked time loop inside the kernel ---
    x_seq = jax.random.normal(k_seq, (batch, seq_len, input_size), dtype=jnp.float32)
    # time_block=4 -> 2 grid steps of 4 unrolled timesteps each, Tb*H = 128 lanes.
    h_seq, s_fin, f_fin = lstm_sequence_forward(x_seq, packed, time_block=4)
    jax.block_until_ready((h_seq, s_fin, f_fin))

    h_seq_ref, s_fin_ref, f_fin_ref = lstm_sequence_reference(x_seq, params)
    assert jnp.allclose(h_seq, h_seq_ref, atol=1e-4), "sequence h mismatch"
    assert jnp.allclose(s_fin, s_fin_ref, atol=1e-4), "sequence s mismatch"
    assert jnp.allclose(f_fin, f_fin_ref, atol=1e-4), "sequence f mismatch"

    print("KERNEL_OK")
</pallas_src>

<mosaic_0001>
module attributes {stable_mosaic.version = 11 : i64} {
  func.func @_lstmcell_kernel(%arg0: memref<8x16xf32, #tpu.memory_space<vmem>>, %arg1: memref<8x32xf32, #tpu.memory_space<vmem>>, %arg2: memref<8x32xf32, #tpu.memory_space<vmem>>, %arg3: memref<16x128xf32, #tpu.memory_space<vmem>>, %arg4: memref<32x64xf32, #tpu.memory_space<vmem>>, %arg5: memref<1x128xf32, #tpu.memory_space<vmem>>, %arg6: memref<1x64xf32, #tpu.memory_space<vmem>>, %arg7: memref<8x96xf32, #tpu.memory_space<vmem>>) attributes {dimension_semantics = [], scalar_prefetch = 0 : i64, scratch_operands = 0 : i64, tpu.core_type = #tpu.core_type<tc>} {
    %c0 = arith.constant 0 : index
    %c0_0 = arith.constant 0 : index
    %0 = vector.load %arg1[%c0, %c0_0] : memref<8x32xf32, #tpu.memory_space<vmem>>, vector<8x32xf32>
    %c0_1 = arith.constant 0 : index
    %c0_2 = arith.constant 0 : index
    %1 = vector.load %arg2[%c0_1, %c0_2] : memref<8x32xf32, #tpu.memory_space<vmem>>, vector<8x32xf32>
    %c0_3 = arith.constant 0 : index
    %c0_4 = arith.constant 0 : index
    %2 = vector.load %arg0[%c0_3, %c0_4] : memref<8x16xf32, #tpu.memory_space<vmem>>, vector<8x16xf32>
    %c0_5 = arith.constant 0 : index
    %c0_6 = arith.constant 0 : index
    %3 = vector.load %arg3[%c0_5, %c0_6] : memref<16x128xf32, #tpu.memory_space<vmem>>, vector<16x128xf32>
    %cst = arith.constant dense<0.000000e+00> : vector<8x128xf32>
    %4 = tpu.matmul %2, %3, %cst {dimension_numbers = #tpu.dot_dimension_numbers<[1], [0], [0], [1], [0, 0, 1, 1], [], []>} : vector<8x16xf32>, vector<16x128xf32>, vector<8x128xf32> -> vector<8x128xf32>
    %c0_7 = arith.constant 0 : index
    %c0_8 = arith.constant 0 : index
    %5 = vector.load %arg5[%c0_7, %c0_8] : memref<1x128xf32, #tpu.memory_space<vmem>>, vector<1x128xf32>
    %6 = vector.broadcast %5 : vector<1x128xf32> to vector<8x128xf32>
    %7 = arith.addf %4, %6 : vector<8x128xf32>
    %c0_9 = arith.constant 0 : index
    %c0_10 = arith.constant 0 : index
    %8 = vector.load %arg4[%c0_9, %c0_10] : memref<32x64xf32, #tpu.memory_space<vmem>>, vector<32x64xf32>
    %cst_11 = arith.constant dense<0.000000e+00> : vector<8x64xf32>
    %9 = tpu.matmul %0, %8, %cst_11 {dimension_numbers = #tpu.dot_dimension_numbers<[1], [0], [0], [1], [0, 0, 1, 1], [], []>} : vector<8x32xf32>, vector<32x64xf32>, vector<8x64xf32> -> vector<8x64xf32>
    %c0_12 = arith.constant 0 : index
    %c0_13 = arith.constant 0 : index
    %10 = vector.load %arg6[%c0_12, %c0_13] : memref<1x64xf32, #tpu.memory_space<vmem>>, vector<1x64xf32>
    %11 = vector.broadcast %10 : vector<1x64xf32> to vector<8x64xf32>
    %12 = arith.addf %9, %11 : vector<8x64xf32>
    %13 = vector.extract_strided_slice %7 {offsets = [0, 0], sizes = [8, 32], strides = [1, 1]} : vector<8x128xf32> to vector<8x32xf32>
    %14 = vector.extract_strided_slice %7 {offsets = [0, 32], sizes = [8, 32], strides = [1, 1]} : vector<8x128xf32> to vector<8x32xf32>
    %15 = vector.extract_strided_slice %7 {offsets = [0, 64], sizes = [8, 64], strides = [1, 1]} : vector<8x128xf32> to vector<8x64xf32>
    %16 = arith.negf %15 : vector<8x64xf32>
    %17 = math.exp %16 : vector<8x64xf32>
    %cst_14 = arith.constant 1.000000e+00 : f32
    %18 = vector.broadcast %cst_14 : f32 to vector<8x64xf32>
    %19 = arith.addf %18, %17 : vector<8x64xf32>
    %20 = arith.divf %18, %19 : vector<8x64xf32>
    %21 = arith.negf %12 : vector<8x64xf32>
    %22 = math.exp %21 : vector<8x64xf32>
    %cst_15 = arith.constant 1.000000e+00 : f32
    %23 = vector.broadcast %cst_15 : f32 to vector<8x64xf32>
    %24 = arith.addf %23, %22 : vector<8x64xf32>
    %25 = arith.divf %23, %24 : vector<8x64xf32>
    %26 = vector.extract_strided_slice %20 {offsets = [0, 0], sizes = [8, 32], strides = [1, 1]} : vector<8x64xf32> to vector<8x32xf32>
    %27 = vector.extract_strided_slice %20 {offsets = [0, 32], sizes = [8, 32], strides = [1, 1]} : vector<8x64xf32> to vector<8x32xf32>
    %28 = vector.extract_strided_slice %25 {offsets = [0, 0], sizes = [8, 32], strides = [1, 1]} : vector<8x64xf32> to vector<8x32xf32>
    %29 = vector.extract_strided_slice %25 {offsets = [0, 32], sizes = [8, 32], strides = [1, 1]} : vector<8x64xf32> to vector<8x32xf32>
    %cst_16 = arith.constant 1.000000e+00 : f32
    %30 = vector.broadcast %cst_16 : f32 to vector<8x32xf32>
    %31 = arith.subf %30, %26 : vector<8x32xf32>
    %32 = arith.mulf %13, %31 : vector<8x32xf32>
    %33 = arith.mulf %0, %26 : vector<8x32xf32>
    %34 = arith.addf %32, %33 : vector<8x32xf32>
    %cst_17 = arith.constant 1.000000e+00 : f32
    %35 = vector.broadcast %cst_17 : f32 to vector<8x32xf32>
    %36 = arith.subf %35, %26 : vector<8x32xf32>
    %37 = arith.mulf %0, %36 : vector<8x32xf32>
    %38 = arith.mulf %1, %28 : vector<8x32xf32>
    %39 = arith.addf %37, %38 : vector<8x32xf32>
    %40 = math.tanh %34 : vector<8x32xf32>
    %41 = arith.mulf %40, %27 : vector<8x32xf32>
    %42 = math.tanh %39 : vector<8x32xf32>
    %43 = arith.mulf %42, %29 : vector<8x32xf32>
    %44 = arith.addf %41, %43 : vector<8x32xf32>
    %45 = arith.addf %44, %14 : vector<8x32xf32>
    %c0_18 = arith.constant 0 : index
    %c0_19 = arith.constant 0 : index
    %46 = vector.load %arg7[%c0_18, %c0_19] : memref<8x96xf32, #tpu.memory_space<vmem>>, vector<8x32xf32>
    tpu.vector_store %arg7[%c0_18, %c0_19], %34 {strides = array<i32>} : memref<8x96xf32, #tpu.memory_space<vmem>>, vector<8x32xf32>,
    %c0_20 = arith.constant 0 : index
    %c32 = arith.constant 32 : index
    %47 = vector.load %arg7[%c0_20, %c32] : memref<8x96xf32, #tpu.memory_space<vmem>>, vector<8x32xf32>
    tpu.vector_store %arg7[%c0_20, %c32], %39 {strides = array<i32>} : memref<8x96xf32, #tpu.memory_space<vmem>>, vector<8x32xf32>,
    %c0_21 = arith.constant 0 : index
    %c64 = arith.constant 64 : index
    %48 = vector.load %arg7[%c0_21, %c64] : memref<8x96xf32, #tpu.memory_space<vmem>>, vector<8x32xf32>
    tpu.vector_store %arg7[%c0_21, %c64], %45 {strides = array<i32>} : memref<8x96xf32, #tpu.memory_space<vmem>>, vector<8x32xf32>,
    return
  }
}

</mosaic_0001>

<llo_original>
// kernel: tpu_custom_call.1
$region0: #{tpu_custom_call.1}
  #allocation0 [shape = 'u32[]', space=smem, size = 0x4, offset = 0x4, fixed_abs, tag = 'smem constant byte address 0x4 - core index']
  #allocation1 [shape = 'u32[72,128]{1,0:T(1,128)}', space=vmem, size = 0x9000, scoped, tag = 'internal scratch']
  %s0 = inlined_call_operand.hbm [shape: f32[8,16], index: 0, kind: input, shape index: {}]
  %s1 = inlined_call_operand.hbm [shape: f32[8,32], index: 1, kind: input, shape index: {}]
  %s2 = inlined_call_operand.hbm [shape: f32[8,32], index: 2, kind: input, shape index: {}]
  %s3 = inlined_call_operand.hbm [shape: f32[16,128], index: 3, kind: input, shape index: {}]
  %s4 = inlined_call_operand.hbm [shape: f32[32,64], index: 4, kind: input, shape index: {}]
  %s5 = inlined_call_operand.vmem [shape: f32[1,128], index: 5, kind: input, shape index: {}]
  %s6 = inlined_call_operand.vmem [shape: f32[1,64], index: 6, kind: input, shape index: {}]
  %s7 = inlined_call_operand.hbm [shape: f32[8,96], index: 7, kind: output, shape index: {}]
  %s8 = sld [smem:[#allocation0]]
  $region58: #{tpu_custom_call.1} parent=0
    _
  %s10 = ssub.s32 1, %s8
  %s11 = scalar_select 0, %s10, %s8
  $region1: #{tpu_custom_call.1} parent=0
    #allocation2 [shape = 'u8[4096]{0}', space=vmem, size = 0x1000, scoped, tag = 'input window, operand 0, single buffered']
    #allocation3 [shape = 's32[1]{0}', space=sflag, size = 0x4, scoped, tag = 'scoped memory for tpu_custom_call.1']
    #allocation4 [shape = 's32[1]{0}', space=sflag, size = 0x4, scoped, tag = 'scoped memory for tpu_custom_call.1']
    #allocation5 [shape = 'u8[4096]{0}', space=vmem, size = 0x1000, scoped, tag = 'input window, operand 1, single buffered']
    #allocation6 [shape = 's32[1]{0}', space=sflag, size = 0x4, scoped, tag = 'scoped memory for tpu_custom_call.1']
    #allocation7 [shape = 'u8[4096]{0}', space=vmem, size = 0x1000, scoped, tag = 'input window, operand 2, single buffered']
    #allocation8 [shape = 'u8[8192]{0}', space=vmem, size = 0x2000, scoped, tag = 'input window, operand 3, single buffered']
    #allocation9 [shape = 's32[1]{0}', space=sflag, size = 0x4, scoped, tag = 'scoped memory for tpu_custom_call.1']
    #allocation10 [shape = 'u8[16384]{0}', space=vmem, size = 0x4000, scoped, tag = 'input window, operand 4, single buffered']
    #allocation11 [shape = 'u8[4096]{0}', space=vmem, size = 0x1000, scoped, tag = 'output window, operand 0, single buffered']
    %12 = vsyncpa [#allocation3], 0
    %13 = vsyncpa [#allocation6], 0
    %14 = vsyncpa [#allocation9], 0
    %15 = vsyncpa [#allocation4], 0
    // Predicated region
    $region2: #{tpu_custom_call.1} parent=1 // pred_check
      _
    $region3: #{tpu_custom_call.1} parent=1 // pred_check_branch
      %17 = sbr.rel (0) target = $region5
    $region4: #{tpu_custom_call.1} parent=1 // pred_region
      %19 = vsyncadd [#allocation3], 0
      %s21 = sshll.u32 %s0, 4
      %s22 = int_to_ptr.hbm [resolvable:$true] %s21
      %s23 = sshll.u32 [#allocation2], 4
      %s24 = int_to_ptr.vmem [resolvable:$true] %s23
      %26 = dma.hbm_to_vmem [thread:$0]  %s22, 128, %s24, [#allocation3]
    $region5: #{tpu_custom_call.1} parent=1 // pred_fallthru
      _
    // Predicated region
    $region6: #{tpu_custom_call.1} parent=1 // pred_check
      _
    $region7: #{tpu_custom_call.1} parent=1 // pred_check_branch
      %28 = sbr.rel (0) target = $region9
    $region8: #{tpu_custom_call.1} parent=1 // pred_region
      %30 = vsyncadd [#allocation6], 0
      %s32 = sshll.u32 %s1, 4
      %s33 = int_to_ptr.hbm [resolvable:$true] %s32
      %s34 = sshll.u32 [#allocation5], 4
      %s35 = int_to_ptr.vmem [resolvable:$true] %s34
      %37 = dma.hbm_to_vmem [thread:$0]  %s33, 128, %s35, [#allocation6]
    $region9: #{tpu_custom_call.1} parent=1 // pred_fallthru
      _
    // Predicated region
    $region10: #{tpu_custom_call.1} parent=1 // pred_check
      _
    $region11: #{tpu_custom_call.1} parent=1 // pred_check_branch
      %39 = sbr.rel (0) target = $region13
    $region12: #{tpu_custom_call.1} parent=1 // pred_region
      %41 = vsyncadd [#allocation6], 0
      %s43 = sshll.u32 %s2, 4
      %s44 = int_to_ptr.hbm [resolvable:$true] %s43
      %s45 = sshll.u32 [#allocation7], 4
      %s46 = int_to_ptr.vmem [resolvable:$true] %s45
      %48 = dma.hbm_to_vmem [thread:$0]  %s44, 128, %s46, [#allocation6]
    $region13: #{tpu_custom_call.1} parent=1 // pred_fallthru
      _
    // Predicated region
    $region14: #{tpu_custom_call.1} parent=1 // pred_check
      _
    $region15: #{tpu_custom_call.1} parent=1 // pred_check_branch
      %50 = sbr.rel (0) target = $region17
    $region16: #{tpu_custom_call.1} parent=1 // pred_region
      %52 = vsyncadd [#allocation9], 0
      %s53 = sshll.u32 %s3, 4
      %s54 = int_to_ptr.hbm [resolvable:$true] %s53
      %s55 = sshll.u32 [#allocation8], 4
      %s56 = int_to_ptr.vmem [resolvable:$true] %s55
      %61 = dma.hbm_to_vmem [thread:$0]  %s54, 256, %s56, [#allocation9], 128, 128, 8
    $region17: #{tpu_custom_call.1} parent=1 // pred_fallthru
      _
    // Predicated region
    $region18: #{tpu_custom_call.1} parent=1 // pred_check
      _
    $region19: #{tpu_custom_call.1} parent=1 // pred_check_branch
      %63 = sbr.rel (0) target = $region21
    $region20: #{tpu_custom_call.1} parent=1 // pred_region
      %65 = vsyncadd [#allocation9], 0
      %s66 = sshll.u32 %s4, 4
      %s67 = int_to_ptr.hbm [resolvable:$true] %s66
      %s68 = sshll.u32 [#allocation10], 4
      %s69 = int_to_ptr.vmem [resolvable:$true] %s68
      %74 = dma.hbm_to_vmem [thread:$0]  %s67, 512, %s69, [#allocation9], 128, 128, 8
    $region21: #{tpu_custom_call.1} parent=1 // pred_fallthru
      _
    // Predicated region
    $region22: #{tpu_custom_call.1} parent=1 // pred_check
      _
    $region23: #{tpu_custom_call.1} parent=1 // pred_check_branch
      %76 = sbr.rel (0) target = $region25
    $region24: #{tpu_custom_call.1} parent=1 // pred_region
      _
    $region25: #{tpu_custom_call.1} parent=1 // pred_fallthru
      _
    // Predicated region
    $region26: #{tpu_custom_call.1} parent=1 // pred_check
      _
    $region27: #{tpu_custom_call.1} parent=1 // pred_check_branch
      %78 = sbr.rel (0) target = $region29
    $region28: #{tpu_custom_call.1} parent=1 // pred_region
      _
    $region29: #{tpu_custom_call.1} parent=1 // pred_fallthru
      _
    // Predicated region
    $region30: #{tpu_custom_call.1} parent=1 // pred_check
      _
    $region31: #{tpu_custom_call.1} parent=1 // pred_check_branch
      %80 = sbr.rel (0) target = $region33
    $region32: #{tpu_custom_call.1} parent=1 // pred_region
      %82 = dma.done [#allocation3], 128
    $region33: #{tpu_custom_call.1} parent=1 // pred_fallthru
      _
    // Predicated region
    $region34: #{tpu_custom_call.1} parent=1 // pred_check
      _
    $region35: #{tpu_custom_call.1} parent=1 // pred_check_branch
      %84 = sbr.rel (0) target = $region37
    $region36: #{tpu_custom_call.1} parent=1 // pred_region
      %86 = dma.done [#allocation6], 128
    $region37: #{tpu_custom_call.1} parent=1 // pred_fallthru
      _
    // Predicated region
    $region38: #{tpu_custom_call.1} parent=1 // pred_check
      _
    $region39: #{tpu_custom_call.1} parent=1 // pred_check_branch
      %88 = sbr.rel (0) target = $region41
    $region40: #{tpu_custom_call.1} parent=1 // pred_region
      %90 = dma.done [#allocation6], 128
    $region41: #{tpu_custom_call.1} parent=1 // pred_fallthru
      _
    // Predicated region
    $region42: #{tpu_custom_call.1} parent=1 // pred_check
      _
    $region43: #{tpu_custom_call.1} parent=1 // pred_check_branch
      %92 = sbr.rel (0) target = $region45
    $region44: #{tpu_custom_call.1} parent=1 // pred_region
      %94 = dma.done [#allocation9], 256
    $region45: #{tpu_custom_call.1} parent=1 // pred_fallthru
      _
    // Predicated region
    $region46: #{tpu_custom_call.1} parent=1 // pred_check
      _
    $region47: #{tpu_custom_call.1} parent=1 // pred_check_branch
      %96 = sbr.rel (0) target = $region49
    $region48: #{tpu_custom_call.1} parent=1 // pred_region
      %98 = dma.done [#allocation9], 512
    $region49: #{tpu_custom_call.1} parent=1 // pred_fallthru
      _
    %v99 = vld [vmem:[#allocation5] sm:$0xff]
    %v100 = vld [vmem:[#allocation7] sm:$0xff]
    %v101 = vld [vmem:[#allocation2] sm:$0xff]
    %v102 = vld [vmem:[#allocation8] sm:$0xff]
    %v103 = vld [vmem:[#allocation8 + $0x8] sm:$0xff]
    %v104 = vld [vmem:[%s5] sm:$0x1]
    %v106 = vperm.slane %v104, 0
    %vm108 = vcmask 130048
    %v110 = vsel %vm108, %v101, 0
    %112 = vmatpush.msra.mxu0 0.0
    %113 = vmatpush.msra.mxu0 0.0
    %114 = vmatpush.msra.mxu0 0.0
    %115 = vmatpush.msra.mxu0 0.0
    %116 = vmatpush.msra.mxu0 0.0
    %117 = vmatpush.msra.mxu0 0.0
    %118 = vmatpush.msra.mxu0 0.0
    %119 = vmatpush.msra.mxu0 0.0
    %120 = vmatpush.msra.mxu0 0.0
    %121 = vmatpush.msra.mxu0 0.0
    %122 = vmatpush.msra.mxu0 0.0
    %123 = vmatpush.msra.mxu0 0.0
    %124 = vmatpush.msra.mxu0 0.0
    %125 = vmatpush.msra.mxu0 0.0
    %126 = vmatpush.msra.mxu0 %v103
    %127 = vmatpush.msra.mxu0 %v102
    %128 = vmatmul.f32.gmra.mxu0 %v110
    %v129 = vpop.f32.mrf.mxu0
    %v130 = vadd.f32 %v106, %v129
    %131 = vdwg.mxu0
    %v132 = vld [vmem:[#allocation10] sm:$0xff]
    %v133 = vld [vmem:[#allocation10 + $0x8] sm:$0xff]
    %v134 = vld [vmem:[#allocation10 + $0x10] sm:$0xff]
    %v135 = vld [vmem:[#allocation10 + $0x18] sm:$0xff]
    %v136 = vld [vmem:[%s6] sm:$0x1]
    %v138 = vperm.slane %v136, 0
    %vm140 = vcmask 261120
    %v142 = vsel %vm140, %v99, 0
    %144 = vmatpush.msra.mxu0 0.0
    %145 = vmatpush.msra.mxu0 0.0
    %146 = vmatpush.msra.mxu0 0.0
    %147 = vmatpush.msra.mxu0 0.0
    %148 = vmatpush.msra.mxu0 0.0
    %149 = vmatpush.msra.mxu0 0.0
    %150 = vmatpush.msra.mxu0 0.0
    %151 = vmatpush.msra.mxu0 0.0
    %152 = vmatpush.msra.mxu0 0.0
    %153 = vmatpush.msra.mxu0 0.0
    %154 = vmatpush.msra.mxu0 0.0
    %155 = vmatpush.msra.mxu0 0.0
    %156 = vmatpush.msra.mxu0 %v135
    %157 = vmatpush.msra.mxu0 %v134
    %158 = vmatpush.msra.mxu0 %v133
    %159 = vmatpush.msra.mxu0 %v132
    %160 = vmatmul.f32.gmra.mxu0 %v142
    %v161 = vpop.f32.mrf.mxu0
    %v162 = vadd.f32 %v138, %v161
    %163 = vdwg.mxu0
    %v164 = vxor.u32 %v130, 2147483648
    %v165 = vmul.f32 %v164, 1.442695
    %v166 = vpow.pop %v165
    %v167 = vadd.f32 %v166, 1.0
    %v168 = vrcp.pop %v167
    %v169 = vmul.f32 %v167, %v168
    %v170 = vsub.f32 1.0, %v169
    %v171 = vmul.f32 %v168, %v170
    %v172 = vadd.f32 %v168, %v171
    %vm173 = vweird.f32 %v167
    %vm174 = vweird.f32 %v168
    %vm175 = vmor %vm173, %vm174
    %v176 = vsel %vm175, %v168, %v172
    %v177 = vand.u32 2147483647, %v167
    %vm178 = vcmp.eq.f32.partialorder %v177, 8.507059e+37
    %v179 = vand.u32 %v167, 2147483648
    %v180 = vor.u32 1.1754944e-38, %v179
    %v181 = vsel %vm178, %v180, %v176
    %v182 = vmul.f32 1.0, %v181
    %v183 = vxor.u32 %v162, 2147483648
    %v184 = vmul.f32 %v183, 1.442695
    %v185 = vpow.pop %v184
    %v186 = vadd.f32 %v185, 1.0
    %v187 = vrcp.pop %v186
    %v188 = vmul.f32 %v186, %v187
    %v189 = vsub.f32 1.0, %v188
    %v190 = vmul.f32 %v187, %v189
    %v191 = vadd.f32 %v187, %v190
    %vm192 = vweird.f32 %v186
    %vm193 = vweird.f32 %v187
    %vm194 = vmor %vm192, %vm193
    %v195 = vsel %vm194, %v187, %v191
    %v196 = vand.u32 2147483647, %v186
    %vm197 = vcmp.eq.f32.partialorder %v196, 8.507059e+37
    %v198 = vand.u32 %v186, 2147483648
    %v199 = vor.u32 1.1754944e-38, %v198
    %v200 = vsel %vm197, %v199, %v195
    %v201 = vmul.f32 1.0, %v200
    %v202 = vsub.f32 1.0, %v182
    %204 = vrot.lane.b32.xlu0 %v202, 64
    %v205 = vpop.permute.xlu0 %204
    %v207 = vmul.f32 %v130, %v205
    %209 = vrot.lane.b32.xlu0 %v182, 64
    %v210 = vpop.permute.xlu0 %209
    %v212 = vmul.f32 %v99, %v210
    %v213 = vadd.f32 %v207, %v212
    %v214 = vmul.f32 %v99, %v205
    %v215 = vmul.f32 %v100, %v201
    %v216 = vadd.f32 %v214, %v215
    %v217 = vtanh.pop %v213
    %218 = vrot.lane.b32.xlu0 %v182, 32
    %v219 = vpop.permute.xlu0 %218
    %v221 = vmul.f32 %v217, %v219
    %v222 = vtanh.pop %v216
    %224 = vrot.lane.b32.xlu0 %v201, 96
    %v225 = vpop.permute.xlu0 %224
    %v227 = vmul.f32 %v222, %v225
    %v228 = vadd.f32 %v221, %v227
    %230 = vrot.lane.b32.xlu0 %v130, 96
    %v231 = vpop.permute.xlu0 %230
    %v233 = vadd.f32 %v228, %v231
    %234 = vst.msk [vmem:[#allocation11] sm:$0xff] %vm140, %v213
    %236 = vrot.lane.b32.xlu0 %v216, 32
    %v237 = vpop.permute.xlu0 %236
    %vm239 = vcmask 523520
    %240 = vst.msk [vmem:[#allocation11] sm:$0xff] %vm239, %v237
    %242 = vrot.lane.b32.xlu0 %v233, 64
    %v243 = vpop.permute.xlu0 %242
    %vm245 = vcmask 785920
    %246 = vst.msk [vmem:[#allocation11] sm:$0xff] %vm245, %v243
    // Predicated region
    $region50: #{tpu_custom_call.1} parent=1 // pred_check
      _
    $region51: #{tpu_custom_call.1} parent=1 // pred_check_branch
      %248 = sbr.rel (0) target = $region53
    $region52: #{tpu_custom_call.1} parent=1 // pred_region
      %250 = vsyncadd [#allocation4], 0
      %s252 = sshll.u32 [#allocation11], 4
      %s253 = int_to_ptr.vmem [resolvable:$true] %s252
      %s254 = sshll.u32 %s7, 4
      %s255 = int_to_ptr.hbm [resolvable:$true] %s254
      %257 = dma.vmem_to_hbm [thread:$0]  %s253, 128, %s255, [#allocation4]
    $region53: #{tpu_custom_call.1} parent=1 // pred_fallthru
      _
    // Predicated region
    $region54: #{tpu_custom_call.1} parent=1 // pred_check
      _
    $region55: #{tpu_custom_call.1} parent=1 // pred_check_branch
      %259 = sbr.rel (0) target = $region57
    $region56: #{tpu_custom_call.1} parent=1 // pred_region
      %261 = dma.done [#allocation4], 128
    $region57: #{tpu_custom_call.1} parent=1 // pred_fallthru
      _
    %262 = vsyncpa [#allocation3], 1
    %263 = vsyncpa [#allocation6], 1
    %264 = vsyncpa [#allocation9], 1
    %265 = vsyncpa [#allocation4], 1

</llo_original>
